<compile_context>
chip_gen: v7x
topology: tpu7x:2x2x1
jax: 0.10.0
libtpu: 0.0.40
codegen_flags: <defaults>
</compile_context>

<pallas_src>
import functools

import jax
import jax.numpy as jnp
from jax.experimental import pallas as pl
from jax.experimental.pallas import tpu as pltpu

_LANES = 128
_SUBLANES = 8
_MAX_N_TILE = 2048      # lane width of each streamed reference-point tile
_M_SENTINEL = 1e8       # padding coordinate for extra sampled rows; must be
                        # far larger than any real coordinate so padded rows
                        # never win min_m (kept finite to avoid 0*inf NaNs).


def _round_up(x, m):
    return ((x + m - 1) // m) * m


def _make_sample_loss_kernel(M, N, Mp, Np, tn):
    """Builds the per-(batch, n-tile) kernel.  All sizes are Python ints."""
    need_m_mask = (Mp != M)
    need_n_mask = (Np != N)
    n_groups = tn // _LANES

    def kernel(lhs_ref, rhs_ref, out_ref, minacc_ref, r2s_ref):
        # lhs_ref    : (1, Mp, 8)  augmented sampled points (resident per batch)
        # rhs_ref    : (1, 8, tn)  augmented reference tile (lane-dense stream)
        # out_ref    : (1, 8, 128) per-batch partial reductions.  Written only on
        #              the last n-tile; relies on Pallas' writeback-on-block-index-
        #              change semantics for accumulator-style outputs (do not add
        #              a per-step writeback).
        # minacc_ref : (Mp, 128)   lane-folded running min of d2 across n tiles
        # r2s_ref    : (1, tn)     running per-lane sum of min_m d2 across n tiles
        nt = pl.program_id(1)
        n_last = pl.num_programs(1) - 1

        @pl.when(nt == 0)
        def _init():
            minacc_ref[...] = jnp.full_like(minacc_ref, jnp.inf)
            r2s_ref[...] = jnp.zeros_like(r2s_ref)

        # Pairwise squared distances on the MXU:
        #   d2 = ||a||^2 + ||b||^2 - 2 a.b   (clamped at 0 against cancellation).
        lhs = lhs_ref[0]                                   # (Mp, 8) f32
        rhs = rhs_ref[0]                                   # (8, tn) f32
        d2 = jnp.dot(lhs, rhs, preferred_element_type=jnp.float32,
                     precision=jax.lax.Precision.HIGHEST)
        d2 = jnp.maximum(d2, 0.0)                          # (Mp, tn)

        def accumulate(d2t, tile_min):
            # sampled -> reference: fold the tn lanes down to 128 with
            # element-wise min first, then RMW only the (Mp, 128) accumulator
            # (keeps vst traffic and scratch VMEM independent of tn).
            folded = d2t[:, 0:_LANES]
            for g in range(1, n_groups):
                folded = jnp.minimum(folded, d2t[:, g * _LANES:(g + 1) * _LANES])
            minacc_ref[...] = jnp.minimum(minacc_ref[...], folded)
            # reference -> sampled: per-lane min over m, accumulated across tiles.
            r2s_ref[...] = r2s_ref[...] + tile_min

        if need_n_mask:
            # Only the last tile contains padded reference lanes; full tiles
            # take an unmasked fast path (no iota / selects).
            @pl.when(nt != n_last)
            def _full_tile():
                accumulate(d2, jnp.min(d2, axis=0, keepdims=True))

            @pl.when(nt == n_last)
            def _partial_tile():
                lane = jax.lax.broadcasted_iota(jnp.int32, (1, tn), 1)
                n_valid = (nt * tn + lane) < N             # (1, tn)
                d2m = jnp.where(n_valid, d2, jnp.inf)
                tile_min = jnp.where(n_valid,
                                     jnp.min(d2m, axis=0, keepdims=True), 0.0)
                accumulate(d2m, tile_min)
        else:
            accumulate(d2, jnp.min(d2, axis=0, keepdims=True))

        @pl.when(nt == n_last)
        def _finalize():
            min_s2r = jnp.min(minacc_ref[...], axis=1, keepdims=True)   # (Mp, 1)
            if need_m_mask:
                # Sentinel-padded sampled rows carry huge (finite) distances so
                # they never win min_m above; here just drop them from sum/max.
                mrow = jax.lax.broadcasted_iota(jnp.int32, (Mp, 1), 0)
                valid_m = mrow < M
                s_sum = jnp.sum(jnp.where(valid_m, min_s2r, 0.0))
                s_max = jnp.max(jnp.where(valid_m, min_s2r, -jnp.inf))
            else:
                s_sum = jnp.sum(min_s2r)
                s_max = jnp.max(min_s2r)
            r_sum = jnp.sum(r2s_ref[...])

            # Pack the 3 per-batch partials into lanes 0..2 of sublane 0.
            lane8 = jax.lax.broadcasted_iota(jnp.int32, (8, 128), 1)
            sub8 = jax.lax.broadcasted_iota(jnp.int32, (8, 128), 0)
            row0 = sub8 == 0
            tile = jnp.where(row0 & (lane8 == 0), s_sum,
                   jnp.where(row0 & (lane8 == 1), s_max,
                   jnp.where(row0 & (lane8 == 2), r_sum, jnp.float32(0.0))))
            out_ref[0] = tile

    return kernel


@functools.partial(jax.jit, static_argnames=("alpha", "beta", "s_beta",
                                              "s_gamma", "s_delta"))
def get_sample_loss(xyz, new_xyz, offset, *,
                    alpha=1.0, beta=1.0, s_beta=1.0, s_gamma=1.0, s_delta=0.0):
    """JAX/Pallas equivalent of get_sample_loss.forward(xyz, new_xyz, offset)."""
    B, N, C = xyz.shape
    _, M, _ = new_xyz.shape
    assert C == 3

    n128 = _round_up(N, _LANES)
    tn = min(n128, _MAX_N_TILE)          # N-tile width (multiple of 128)
    Np = _round_up(N, tn)
    Mp = _round_up(M, _SUBLANES)
    n_tiles = Np // tn

    xyz32 = xyz.astype(jnp.float32)
    new32 = new_xyz.astype(jnp.float32)

    # ---- augmented RHS (B, 8, Np), lane-dense over the reference points ----
    #   rows: [-2x, -2y, -2z, 1, ||b||^2, 0, 0, 0]
    xyz_t = jnp.transpose(xyz32, (0, 2, 1))                       # (B, 3, N)
    b_sq = jnp.sum(xyz_t * xyz_t, axis=1, keepdims=True)          # (B, 1, N)
    rhs = jnp.concatenate(
        [-2.0 * xyz_t,
         jnp.ones((B, 1, N), jnp.float32),
         b_sq,
         jnp.zeros((B, 3, N), jnp.float32)], axis=1)              # (B, 8, N)
    if Np != N:
        rhs = jnp.pad(rhs, ((0, 0), (0, 0), (0, Np - N)))

    # ---- augmented LHS (B, Mp, 8); pad extra rows with a huge sentinel ----
    #   cols: [x, y, z, ||a||^2, 1, 0, 0, 0]
    if Mp != M:
        new_p = jnp.pad(new32, ((0, 0), (0, Mp - M), (0, 0)),
                        constant_values=_M_SENTINEL)
    else:
        new_p = new32
    a_sq = jnp.sum(new_p * new_p, axis=2, keepdims=True)          # (B, Mp, 1)
    lhs = jnp.concatenate(
        [new_p, a_sq,
         jnp.ones((B, Mp, 1), jnp.float32),
         jnp.zeros((B, Mp, 3), jnp.float32)], axis=2)             # (B, Mp, 8)

    kernel = _make_sample_loss_kernel(M, N, Mp, Np, tn)

    partials = pl.pallas_call(
        kernel,
        out_shape=jax.ShapeDtypeStruct((B, 8, 128), jnp.float32),
        grid_spec=pltpu.PrefetchScalarGridSpec(
            num_scalar_prefetch=0,
            grid=(B, n_tiles),
            in_specs=[
                pl.BlockSpec((1, Mp, 8), lambda b, n: (b, 0, 0)),   # augmented sampled
                pl.BlockSpec((1, 8, tn), lambda b, n: (b, 0, n)),   # augmented ref tile
            ],
            out_specs=pl.BlockSpec((1, 8, 128), lambda b, n: (b, 0, 0)),
            scratch_shapes=[
                pltpu.VMEM((Mp, _LANES), jnp.float32),   # lane-folded running min
                pltpu.VMEM((1, tn), jnp.float32),        # running sum of min_m
            ],
        ),
        compiler_params=pltpu.CompilerParams(
            dimension_semantics=("parallel", "arbitrary")),
    )(lhs, rhs)
    # TODO(synk): for v7x with B == 1, add a second size-2 "parallel" grid axis
    # splitting the N range (per-half partial outputs combined in the wrapper)
    # so both TensorCores stay busy.

    s_sum = partials[:, 0, 0]   # (B,) sum_m  min_n d2
    s_max = partials[:, 0, 1]   # (B,) max_m  min_n d2
    r_sum = partials[:, 0, 2]   # (B,) sum_n  min_m d2

    cost_p1_p2 = jnp.mean(s_sum) / M
    max_cost = jnp.mean(s_max)
    cost_p2_p1 = jnp.mean(r_sum) / N
    similarity_loss = (cost_p1_p2 + s_beta * max_cost
                       + (s_gamma + s_delta * M) * cost_p2_p1)

    # Offset term is a tiny O(B*M) reduction that XLA fuses trivially; keeping it
    # out of the kernel removes a lane-padded (1, Mp, 3) resident VMEM block.
    offset_loss = jnp.mean(jnp.linalg.norm(offset.astype(jnp.float32), axis=-1))
    return alpha * similarity_loss + beta * offset_loss


def _reference_jax(xyz, new_xyz, offset, alpha, beta, s_beta, s_gamma, s_delta):
    """Pure-JAX reference for sanity checking."""
    diff = new_xyz[:, :, None, :] - xyz[:, None, :, :]   # (B, M, N, 3)
    d2 = jnp.sum(diff * diff, axis=-1)                   # (B, M, N)
    min_s2r = jnp.min(d2, axis=2)
    min_r2s = jnp.min(d2, axis=1)
    cost_p1_p2 = jnp.mean(min_s2r)
    max_cost = jnp.mean(jnp.max(min_s2r, axis=1))
    cost_p2_p1 = jnp.mean(min_r2s)
    M = new_xyz.shape[1]
    sim = cost_p1_p2 + s_beta * max_cost + (s_gamma + s_delta * M) * cost_p2_p1
    off_loss = jnp.mean(jnp.linalg.norm(offset, axis=-1))
    return alpha * sim + beta * off_loss


if __name__ == "__main__":
    # Deterministic hyper-parameters (from __init__ signature).
    alpha, beta = 1.0, 0.5
    S_beta, S_gamma, S_delta = 1.0, 1.0, 0.0

    key = jax.random.PRNGKey(0)
    keys = jax.random.split(key, 9)

    def _check(xyz, new_xyz, offset):
        loss = get_sample_loss(xyz, new_xyz, offset,
                               alpha=alpha, beta=beta,
                               s_beta=S_beta, s_gamma=S_gamma, s_delta=S_delta)
        loss = jax.block_until_ready(loss)
        ref = _reference_jax(xyz, new_xyz, offset, alpha, beta,
                             S_beta, S_gamma, S_delta)
        assert jnp.allclose(loss, ref, rtol=1e-4, atol=1e-4), (loss, ref)

    # Case 1: small shapes consistent with the module's forward.
    B, N, M = 2, 16, 8
    xyz = jax.random.normal(keys[0], (B, N, 3), dtype=jnp.float32)      # full cloud
    new_xyz = jax.random.normal(keys[1], (B, M, 3), dtype=jnp.float32)  # sampled pts
    offset = 0.1 * jax.random.normal(keys[2], (B, M, 3), dtype=jnp.float32)
    _check(xyz, new_xyz, offset)

    # Case 2: non-aligned sizes exercising M/N padding masks within one tile.
    B2, N2, M2 = 2, 1000, 100
    xyz2 = jax.random.normal(keys[3], (B2, N2, 3), dtype=jnp.float32)
    new2 = jax.random.normal(keys[4], (B2, M2, 3), dtype=jnp.float32)
    off2 = 0.1 * jax.random.normal(keys[5], (B2, M2, 3), dtype=jnp.float32)
    _check(xyz2, new2, off2)

    # Case 3: multi-tile N axis (n_tiles > 1) with a partial last tile.
    B3, N3, M3 = 1, 2500, 30
    xyz3 = jax.random.normal(keys[6], (B3, N3, 3), dtype=jnp.float32)
    new3 = jax.random.normal(keys[7], (B3, M3, 3), dtype=jnp.float32)
    off3 = 0.1 * jax.random.normal(keys[8], (B3, M3, 3), dtype=jnp.float32)
    _check(xyz3, new3, off3)

    print("KERNEL_OK")
</pallas_src>

<mosaic_0001>
module attributes {stable_mosaic.version = 11 : i64} {
  func.func @kernel(%arg0: i32, %arg1: i32, %arg2: memref<1x8x8xf32, #tpu.memory_space<vmem>>, %arg3: memref<1x8x128xf32, #tpu.memory_space<vmem>>, %arg4: memref<1x8x128xf32, #tpu.memory_space<vmem>>, %arg5: memref<8x128xf32, #tpu.memory_space<vmem>>, %arg6: memref<1x128xf32, #tpu.memory_space<vmem>>) attributes {dimension_semantics = [#tpu.dimension_semantics<parallel>, #tpu.dimension_semantics<arbitrary>], iteration_bounds = array<i64: 2, 1>, scalar_prefetch = 0 : i64, scratch_operands = 2 : i64, tpu.core_type = #tpu.core_type<tc>, window_params = [{transform_indices = @transform_0, window_bounds = array<i64: 1, 8, 8>}, {transform_indices = @transform_1, window_bounds = array<i64: 1, 8, 128>}, {transform_indices = @transform_2, window_bounds = array<i64: 1, 8, 128>}]} {
    %c0_i32 = arith.constant 0 : i32
    %0 = arith.cmpi eq, %arg1, %c0_i32 : i32
    %1 = arith.extui %0 : i1 to i32
    %c0_i32_0 = arith.constant 0 : i32
    %2 = arith.cmpi ne, %1, %c0_i32_0 : i32
    scf.if %2 {
      %cst_13 = arith.constant 0x7F800000 : f32
      %19 = vector.broadcast %cst_13 : f32 to vector<8x128xf32>
      %c0_14 = arith.constant 0 : index
      %c0_15 = arith.constant 0 : index
      %20 = vector.load %arg5[%c0_14, %c0_15] : memref<8x128xf32, #tpu.memory_space<vmem>>, vector<8x128xf32>
      tpu.vector_store %arg5[%c0_14, %c0_15], %19 {strides = array<i32>} : memref<8x128xf32, #tpu.memory_space<vmem>>, vector<8x128xf32>,
      %cst_16 = arith.constant 0.000000e+00 : f32
      %21 = vector.broadcast %cst_16 : f32 to vector<1x128xf32>
      %c0_17 = arith.constant 0 : index
      %c0_18 = arith.constant 0 : index
      %22 = vector.load %arg6[%c0_17, %c0_18] : memref<1x128xf32, #tpu.memory_space<vmem>>, vector<1x128xf32>
      tpu.vector_store %arg6[%c0_17, %c0_18], %21 {strides = array<i32>} : memref<1x128xf32, #tpu.memory_space<vmem>>, vector<1x128xf32>,
    } else {
    }
    %c0 = arith.constant 0 : index
    %c0_1 = arith.constant 0 : index
    %c0_2 = arith.constant 0 : index
    %3 = vector.load %arg2[%c0, %c0_1, %c0_2] : memref<1x8x8xf32, #tpu.memory_space<vmem>>, vector<1x8x8xf32>
    %4 = vector.shape_cast %3 : vector<1x8x8xf32> to vector<8x8xf32>
    %c0_3 = arith.constant 0 : index
    %c0_4 = arith.constant 0 : index
    %c0_5 = arith.constant 0 : index
    %5 = vector.load %arg3[%c0_3, %c0_4, %c0_5] : memref<1x8x128xf32, #tpu.memory_space<vmem>>, vector<1x8x128xf32>
    %6 = vector.shape_cast %5 : vector<1x8x128xf32> to vector<8x128xf32>
    %cst = arith.constant dense<0.000000e+00> : vector<8x128xf32>
    %7 = tpu.matmul %4, %6, %cst {dimension_numbers = #tpu.dot_dimension_numbers<[1], [0], [0], [1], [0, 0, 1, 1], [], []>, precision = #tpu.contract_precision<fp32>} : vector<8x8xf32>, vector<8x128xf32>, vector<8x128xf32> -> vector<8x128xf32>
    %cst_6 = arith.constant 0.000000e+00 : f32
    %8 = vector.broadcast %cst_6 : f32 to vector<8x128xf32>
    %9 = arith.maximumf %7, %8 : vector<8x128xf32>
    %c0_i32_7 = arith.constant 0 : i32
    %10 = arith.cmpi ne, %arg1, %c0_i32_7 : i32
    %11 = arith.extui %10 : i1 to i32
    %c0_i32_8 = arith.constant 0 : i32
    %12 = arith.cmpi ne, %11, %c0_i32_8 : i32
    scf.if %12 {
      %cst_13 = arith.constant dense<0x7F800000> : vector<128xf32>
      %19 = vector.multi_reduction <minimumf>, %9, %cst_13 [0] : vector<8x128xf32> to vector<128xf32>
      %20 = vector.shape_cast %19 : vector<128xf32> to vector<1x128xf32>
      %c0_14 = arith.constant 0 : index
      %c0_15 = arith.constant 0 : index
      %21 = vector.load %arg5[%c0_14, %c0_15] : memref<8x128xf32, #tpu.memory_space<vmem>>, vector<8x128xf32>
      %22 = arith.minimumf %21, %9 : vector<8x128xf32>
      %c0_16 = arith.constant 0 : index
      %c0_17 = arith.constant 0 : index
      %23 = vector.load %arg5[%c0_16, %c0_17] : memref<8x128xf32, #tpu.memory_space<vmem>>, vector<8x128xf32>
      tpu.vector_store %arg5[%c0_16, %c0_17], %22 {strides = array<i32>} : memref<8x128xf32, #tpu.memory_space<vmem>>, vector<8x128xf32>,
      %c0_18 = arith.constant 0 : index
      %c0_19 = arith.constant 0 : index
      %24 = vector.load %arg6[%c0_18, %c0_19] : memref<1x128xf32, #tpu.memory_space<vmem>>, vector<1x128xf32>
      %25 = arith.addf %24, %20 : vector<1x128xf32>
      %c0_20 = arith.constant 0 : index
      %c0_21 = arith.constant 0 : index
      %26 = vector.load %arg6[%c0_20, %c0_21] : memref<1x128xf32, #tpu.memory_space<vmem>>, vector<1x128xf32>
      tpu.vector_store %arg6[%c0_20, %c0_21], %25 {strides = array<i32>} : memref<1x128xf32, #tpu.memory_space<vmem>>, vector<1x128xf32>,
    } else {
    }
    %c0_i32_9 = arith.constant 0 : i32
    %13 = arith.cmpi eq, %arg1, %c0_i32_9 : i32
    %14 = arith.extui %13 : i1 to i32
    %c0_i32_10 = arith.constant 0 : i32
    %15 = arith.cmpi ne, %14, %c0_i32_10 : i32
    scf.if %15 {
      %19 = tpu.iota {dimensions = array<i32: 1>} : vector<1x128xi32>
      %c128_i32 = arith.constant 128 : i32
      %20 = arith.muli %arg1, %c128_i32 : i32
      %21 = vector.broadcast %20 : i32 to vector<1x128xi32>
      %22 = arith.addi %21, %19 : vector<1x128xi32>
      %c16_i32 = arith.constant 16 : i32
      %23 = vector.broadcast %c16_i32 : i32 to vector<1x128xi32>
      %24 = arith.cmpi slt, %22, %23 : vector<1x128xi32>
      %cst_13 = arith.constant 0x7F800000 : f32
      %25 = vector.shape_cast %24 : vector<1x128xi1> to vector<1x128xi1>
      %26 = vector.broadcast %25 : vector<1x128xi1> to vector<8x128xi1>
      %27 = vector.broadcast %cst_13 : f32 to vector<8x128xf32>
      %28 = arith.select %26, %9, %27 : vector<8x128xi1>, vector<8x128xf32>
      %cst_14 = arith.constant dense<0x7F800000> : vector<128xf32>
      %29 = vector.multi_reduction <minimumf>, %28, %cst_14 [0] : vector<8x128xf32> to vector<128xf32>
      %30 = vector.shape_cast %29 : vector<128xf32> to vector<1x128xf32>
      %cst_15 = arith.constant 0.000000e+00 : f32
      %31 = vector.broadcast %cst_15 : f32 to vector<1x128xf32>
      %32 = arith.select %24, %30, %31 : vector<1x128xi1>, vector<1x128xf32>
      %c0_16 = arith.constant 0 : index
      %c0_17 = arith.constant 0 : index
      %33 = vector.load %arg5[%c0_16, %c0_17] : memref<8x128xf32, #tpu.memory_space<vmem>>, vector<8x128xf32>
      %34 = arith.minimumf %33, %28 : vector<8x128xf32>
      %c0_18 = arith.constant 0 : index
      %c0_19 = arith.constant 0 : index
      %35 = vector.load %arg5[%c0_18, %c0_19] : memref<8x128xf32, #tpu.memory_space<vmem>>, vector<8x128xf32>
      tpu.vector_store %arg5[%c0_18, %c0_19], %34 {strides = array<i32>} : memref<8x128xf32, #tpu.memory_space<vmem>>, vector<8x128xf32>,
      %c0_20 = arith.constant 0 : index
      %c0_21 = arith.constant 0 : index
      %36 = vector.load %arg6[%c0_20, %c0_21] : memref<1x128xf32, #tpu.memory_space<vmem>>, vector<1x128xf32>
      %37 = arith.addf %36, %32 : vector<1x128xf32>
      %c0_22 = arith.constant 0 : index
      %c0_23 = arith.constant 0 : index
      %38 = vector.load %arg6[%c0_22, %c0_23] : memref<1x128xf32, #tpu.memory_space<vmem>>, vector<1x128xf32>
      tpu.vector_store %arg6[%c0_22, %c0_23], %37 {strides = array<i32>} : memref<1x128xf32, #tpu.memory_space<vmem>>, vector<1x128xf32>,
    } else {
    }
    %c0_i32_11 = arith.constant 0 : i32
    %16 = arith.cmpi eq, %arg1, %c0_i32_11 : i32
    %17 = arith.extui %16 : i1 to i32
    %c0_i32_12 = arith.constant 0 : i32
    %18 = arith.cmpi ne, %17, %c0_i32_12 : i32
    scf.if %18 {
      %c0_13 = arith.constant 0 : index
      %c0_14 = arith.constant 0 : index
      %19 = vector.load %arg5[%c0_13, %c0_14] : memref<8x128xf32, #tpu.memory_space<vmem>>, vector<8x128xf32>
      %cst_15 = arith.constant dense<0x7F800000> : vector<8xf32>
      %20 = vector.multi_reduction <minimumf>, %19, %cst_15 [1] : vector<8x128xf32> to vector<8xf32>
      %21 = vector.shape_cast %20 : vector<8xf32> to vector<8x1xf32>
      %22 = vector.shape_cast %21 : vector<8x1xf32> to vector<1x8x1xf32>
      %cst_16 = arith.constant dense<0.000000e+00> : vector<1xf32>
      %23 = vector.multi_reduction <add>, %22, %cst_16 [1, 2] : vector<1x8x1xf32> to vector<1xf32>
      %24 = vector.shape_cast %23 : vector<1xf32> to vector<1x1x1xf32>
      %25 = vector.extract %24[0, 0, 0] : f32 from vector<1x1x1xf32>
      %26 = vector.shape_cast %21 : vector<8x1xf32> to vector<1x8x1xf32>
      %cst_17 = arith.constant dense<0xFF800000> : vector<1xf32>
      %27 = vector.multi_reduction <maximumf>, %26, %cst_17 [1, 2] : vector<1x8x1xf32> to vector<1xf32>
      %28 = vector.shape_cast %27 : vector<1xf32> to vector<1x1x1xf32>
      %29 = vector.extract %28[0, 0, 0] : f32 from vector<1x1x1xf32>
      %c0_18 = arith.constant 0 : index
      %c0_19 = arith.constant 0 : index
      %30 = vector.load %arg6[%c0_18, %c0_19] : memref<1x128xf32, #tpu.memory_space<vmem>>, vector<1x128xf32>
      %31 = vector.shape_cast %30 : vector<1x128xf32> to vector<1x1x128xf32>
      %cst_20 = arith.constant dense<0.000000e+00> : vector<1xf32>
      %32 = vector.multi_reduction <add>, %31, %cst_20 [1, 2] : vector<1x1x128xf32> to vector<1xf32>
      %33 = vector.shape_cast %32 : vector<1xf32> to vector<1x1x1xf32>
      %34 = vector.extract %33[0, 0, 0] : f32 from vector<1x1x1xf32>
      %35 = tpu.iota {dimensions = array<i32: 1>} : vector<8x128xi32>
      %36 = tpu.iota {dimensions = array<i32: 0>} : vector<8x128xi32>
      %c0_i32_21 = arith.constant 0 : i32
      %37 = vector.broadcast %c0_i32_21 : i32 to vector<8x128xi32>
      %38 = arith.cmpi eq, %36, %37 : vector<8x128xi32>
      %c0_i32_22 = arith.constant 0 : i32
      %39 = vector.broadcast %c0_i32_22 : i32 to vector<8x128xi32>
      %40 = arith.cmpi eq, %35, %39 : vector<8x128xi32>
      %41 = arith.andi %38, %40 : vector<8x128xi1>
      %c1_i32 = arith.constant 1 : i32
      %42 = vector.broadcast %c1_i32 : i32 to vector<8x128xi32>
      %43 = arith.cmpi eq, %35, %42 : vector<8x128xi32>
      %44 = arith.andi %38, %43 : vector<8x128xi1>
      %c2_i32 = arith.constant 2 : i32
      %45 = vector.broadcast %c2_i32 : i32 to vector<8x128xi32>
      %46 = arith.cmpi eq, %35, %45 : vector<8x128xi32>
      %47 = arith.andi %38, %46 : vector<8x128xi1>
      %cst_23 = arith.constant 0.000000e+00 : f32
      %48 = vector.broadcast %34 : f32 to vector<8x128xf32>
      %49 = vector.broadcast %cst_23 : f32 to vector<8x128xf32>
      %50 = arith.select %47, %48, %49 : vector<8x128xi1>, vector<8x128xf32>
      %51 = vector.broadcast %29 : f32 to vector<8x128xf32>
      %52 = arith.select %44, %51, %50 : vector<8x128xi1>, vector<8x128xf32>
      %53 = vector.broadcast %25 : f32 to vector<8x128xf32>
      %54 = arith.select %41, %53, %52 : vector<8x128xi1>, vector<8x128xf32>
      %c0_24 = arith.constant 0 : index
      %c0_25 = arith.constant 0 : index
      %c0_26 = arith.constant 0 : index
      %55 = vector.load %arg4[%c0_24, %c0_25, %c0_26] : memref<1x8x128xf32, #tpu.memory_space<vmem>>, vector<1x8x128xf32>
      %56 = vector.shape_cast %55 : vector<1x8x128xf32> to vector<8x128xf32>
      %57 = vector.shape_cast %54 : vector<8x128xf32> to vector<1x8x128xf32>
      tpu.vector_store %arg4[%c0_24, %c0_25, %c0_26], %57 {strides = array<i32>} : memref<1x8x128xf32, #tpu.memory_space<vmem>>, vector<1x8x128xf32>,
    } else {
    }
    return
  }
  func.func @transform_0(%arg0: i32, %arg1: i32) -> (i32, i32, i32) {
    %c0_i32 = arith.constant 0 : i32
    %c0_i32_0 = arith.constant 0 : i32
    %c0_i32_1 = arith.constant 0 : i32
    return %arg0, %c0_i32, %c0_i32_0 : i32, i32, i32
  }
  func.func @transform_1(%arg0: i32, %arg1: i32) -> (i32, i32, i32) {
    %c0_i32 = arith.constant 0 : i32
    %c0_i32_0 = arith.constant 0 : i32
    return %arg0, %c0_i32, %arg1 : i32, i32, i32
  }
  func.func @transform_2(%arg0: i32, %arg1: i32) -> (i32, i32, i32) {
    %c0_i32 = arith.constant 0 : i32
    %c0_i32_0 = arith.constant 0 : i32
    %c0_i32_1 = arith.constant 0 : i32
    return %arg0, %c0_i32, %c0_i32_0 : i32, i32, i32
  }
}

</mosaic_0001>

<llo_original>
// kernel: get_sample_loss.1
$region0: #{get_sample_loss.1}
  #allocation0 [shape = 'u32[]', space=smem, size = 0x4, offset = 0x4, fixed_abs, tag = 'smem constant byte address 0x4 - core index']
  #allocation1 [shape = 'u32[144,128]{1,0:T(1,128)}', space=vmem, size = 0x12000, scoped, tag = 'internal scratch']
  #allocation2 [shape = 'f32[8,128]{1,0:T(8,128)}', space=vmem, size = 0x1000, scoped, tag = 'scratch operand']
  #allocation3 [shape = 'f32[1,128]{1,0:T(1,128)}', space=vmem, size = 0x200, scoped, tag = 'scratch operand']
  %s0 = inlined_call_operand.vmem [shape: f32[2,8,8], index: 0, kind: input, shape index: {}]
  %s1 = inlined_call_operand.vmem [shape: f32[2,8,128], index: 1, kind: input, shape index: {}]
  %s2 = inlined_call_operand.vmem [shape: f32[2,8,128], index: 2, kind: output, shape index: {}]
  %s3 = sld [smem:[#allocation0]]
  $region53: #{get_sample_loss.1} parent=0
    _
  %s5 = ssub.s32 1, %s3
  %s6 = scalar_select 0, %s5, %s3
  loop: start=0, step=1, limit=4
  $region2: #{get_sample_loss.1} parent=0 // loop_pre_header
    _
  $region3: #{get_sample_loss.1} parent=0 // loop_header
    %s8 = sphi 0, %s12
    %p9 = scmp.ge.s32.totalorder %s8, 4
    %s15 = sphi 0, %s27
    %s16 = sphi 0, %s23
    %s17 = sphi 0, %s15
    %s18 = sphi 0, %s16
    %s19 = sphi 0, %s17
    %s20 = sphi 0, %s18
    %s30 = sphi 0, %s32
    %s33 = sphi 0, %s30
    %s34 = sphi 0, %s33
    %s50 = sphi 0, %s34
    %s58 = sphi 0, %s60
    %s61 = sphi 0, %s58
    %s62 = sphi 0, %s61
    %s78 = sphi 0, %s62
    %s84 = sphi 0, %s86
    %s87 = sphi 0, %s84
    %s88 = sphi 0, %s87
    %s104 = sphi 0, %s88
  $region4: #{get_sample_loss.1} parent=0 // loop_header_branch
    %11 = sbr.rel (%p9) target = $region8
  $region5: #{get_sample_loss.1} parent=0 // loop_body
    %s13 = ssub.s32 %s8, 1
    %s14 = ssub.s32 %s8, 2
    %s21 = sadd.s32 1, %s16
    %p22 = scmp.ge.s32.totalorder %s21, 1
    %s23 = scalar_select %p22, 0, %s21
    %s24 = sadd.s32 1, %s15
    %s25 = scalar_select %p22, %s24, %s15
    %p26 = scmp.ge.s32.totalorder %s25, 2
    %s27 = scalar_select %p26, 0, %s25
    %s28 = ssub.s32 %s15, %s27
    %p29 = scmp.eq.s32.totalorder %s28, 0
    %s31 = sadd.s32 %s30, 1
    %s32 = scalar_select %p29, %s30, %s31
    %p35 = pneg %p29
    %p36 = scmp.eq.s32.totalorder %s8, 1
    %p37 = por %p35, %p36
    %p38 = scmp.ne.s32.totalorder %s30, %s33
    %p39 = scmp.eq.s32.totalorder %s8, 0
    %p40 = por %p38, %p39
    %p41 = scmp.ne.s32.totalorder %s30, %s33
    %p42 = scmp.eq.s32.totalorder %s13, 1
    %p43 = por %p41, %p42
    %p44 = scmp.ne.s32.totalorder %s33, %s34
    %p45 = scmp.eq.s32.totalorder %s13, 0
    %p46 = por %p44, %p45
    %p47 = scmp.ne.s32.totalorder %s33, %s34
    %p48 = scmp.eq.s32.totalorder %s14, 1
    %p49 = por %p47, %p48
    %p51 = scmp.ne.s32.totalorder %s34, %s50
    %p52 = scmp.eq.s32.totalorder %s14, 0
    %p53 = por %p51, %p52
    %s54 = ssub.s32 %s15, %s27
    %s55 = ssub.s32 %s16, %s23
    %s56 = sor.u32 %s54, %s55
    %p57 = scmp.eq.s32.totalorder %s56, 0
    %s59 = sadd.s32 %s58, 1
    %s60 = scalar_select %p57, %s58, %s59
    %p63 = pneg %p57
    %p64 = scmp.eq.s32.totalorder %s8, 1
    %p65 = por %p63, %p64
    %p66 = scmp.ne.s32.totalorder %s58, %s61
    %p67 = scmp.eq.s32.totalorder %s8, 0
    %p68 = por %p66, %p67
    %p69 = scmp.ne.s32.totalorder %s58, %s61
    %p70 = scmp.eq.s32.totalorder %s13, 1
    %p71 = por %p69, %p70
    %p72 = scmp.ne.s32.totalorder %s61, %s62
    %p73 = scmp.eq.s32.totalorder %s13, 0
    %p74 = por %p72, %p73
    %p75 = scmp.ne.s32.totalorder %s61, %s62
    %p76 = scmp.eq.s32.totalorder %s14, 1
    %p77 = por %p75, %p76
    %p79 = scmp.ne.s32.totalorder %s62, %s78
    %p80 = scmp.eq.s32.totalorder %s14, 0
    %p81 = por %p79, %p80
    %s82 = ssub.s32 %s15, %s27
    %p83 = scmp.eq.s32.totalorder %s82, 0
    %s85 = sadd.s32 %s84, 1
    %s86 = scalar_select %p83, %s84, %s85
    %p89 = pneg %p83
    %p90 = scmp.eq.s32.totalorder %s8, 1
    %p91 = por %p89, %p90
    %p92 = scmp.ne.s32.totalorder %s84, %s87
    %p93 = scmp.eq.s32.totalorder %s8, 0
    %p94 = por %p92, %p93
    %p95 = scmp.ne.s32.totalorder %s84, %s87
    %p96 = scmp.eq.s32.totalorder %s13, 1
    %p97 = por %p95, %p96
    %p98 = scmp.ne.s32.totalorder %s87, %s88
    %p99 = scmp.eq.s32.totalorder %s13, 0
    %p100 = por %p98, %p99
    %p101 = scmp.ne.s32.totalorder %s87, %s88
    %p102 = scmp.eq.s32.totalorder %s14, 1
    %p103 = por %p101, %p102
    %p105 = scmp.ne.s32.totalorder %s88, %s104
    %p106 = scmp.eq.s32.totalorder %s14, 0
    %p107 = por %p105, %p106
    %p108 = scmp.le.s32.totalorder 1, %s8
    %p109 = scmp.lt.s32.totalorder %s8, 3
    %p110 = pnand %p108, %p109
    %p111 = pneg %p110
    // Predicated region
    $region9: #{get_sample_loss.1} parent=5 // pred_check
      _
    $region10: #{get_sample_loss.1} parent=5 // pred_check_branch
      %113 = sbr.rel (%p110) target = $region12
    $region11: #{get_sample_loss.1} parent=5 // pred_region
      %s114 = ssub.s32 %s8, 1
    $region12: #{get_sample_loss.1} parent=5 // pred_fallthru
      _
    %p115 = scmp.lt.s32.totalorder %s8, 2
    // Predicated region
    $region13: #{get_sample_loss.1} parent=5 // pred_check
      %p116 = pneg %p115
    $region14: #{get_sample_loss.1} parent=5 // pred_check_branch
      %118 = sbr.rel (%p116) target = $region16
    $region15: #{get_sample_loss.1} parent=5 // pred_region
      // Predicated region
      $region17: #{get_sample_loss.1} parent=15 // pred_check
        %p119 = pneg %p40
      $region18: #{get_sample_loss.1} parent=15 // pred_check_branch
        %121 = sbr.rel (%p119) target = $region20
      $region19: #{get_sample_loss.1} parent=15 // pred_region
        %p122 = scmp.lt.s32.totalorder %s15, 1
        %s123 = scalar_select %p122, %s15, 1
        %s124 = smul.addr %s123, 8
        %s125 = scalar_lea.vmem %s0, %s124
      $region20: #{get_sample_loss.1} parent=15 // pred_fallthru
        _
      // Predicated region
      $region21: #{get_sample_loss.1} parent=15 // pred_check
        %p126 = pneg %p68
      $region22: #{get_sample_loss.1} parent=15 // pred_check_branch
        %128 = sbr.rel (%p126) target = $region24
      $region23: #{get_sample_loss.1} parent=15 // pred_region
        %p129 = scmp.lt.s32.totalorder %s15, 1
        %s130 = scalar_select %p129, %s15, 1
        %p131 = scmp.lt.s32.totalorder %s16, 0
        %s132 = scalar_select %p131, %s16, 0
        %s133 = sadd.s32 %s132, %s130
        %s134 = smul.addr %s133, 8
        %s135 = scalar_lea.vmem %s1, %s134
      $region24: #{get_sample_loss.1} parent=15 // pred_fallthru
        _
    $region16: #{get_sample_loss.1} parent=5 // pred_fallthru
      _
    %p136 = scmp.le.s32.totalorder 1, %s8
    %p137 = scmp.lt.s32.totalorder %s8, 3
    %p138 = pnand %p136, %p137
    %p139 = pneg %p138
    // Predicated region
    $region25: #{get_sample_loss.1} parent=5 // pred_check
      _
    $region26: #{get_sample_loss.1} parent=5 // pred_check_branch
      %141 = sbr.rel (%p138) target = $region28
    $region27: #{get_sample_loss.1} parent=5 // pred_region
      %s142 = ssub.s32 %s8, 1
      %p143 = scmp.lt.s32.totalorder %s17, 1
      %s144 = scalar_select %p143, %s17, 1
      %s145 = smul.addr %s144, 8
      %s146 = scalar_lea.vmem %s0, %s145
      %p147 = pneg %p46
      %p148 = pneg %p43
      %p149 = scmp.lt.s32.totalorder %s17, 1
      %s150 = scalar_select %p149, %s17, 1
      %p151 = scmp.lt.s32.totalorder %s18, 0
      %s152 = scalar_select %p151, %s18, 0
      %s153 = sadd.s32 %s152, %s150
      %s154 = smul.addr %s153, 8
      %s155 = scalar_lea.vmem %s1, %s154
      %p156 = pneg %p74
      %p157 = pneg %p71
      %p158 = pneg %p100
      %p159 = pneg %p97
      %p160 = scmp.lt.s32.totalorder %s17, 1
      %s161 = scalar_select %p160, %s17, 1
      %s162 = smul.addr %s161, 8
      %s163 = scalar_lea.vmem %s2, %s162
      %p164 = scmp.lt.s32.totalorder %s17, 1
      %s165 = scalar_select %p164, %s17, 1
      %s166 = smul.addr %s165, 8
      %s167 = scalar_lea.vmem %s0, %s166
      %p168 = scmp.lt.s32.totalorder %s17, 1
      %s169 = scalar_select %p168, %s17, 1
      %p170 = scmp.lt.s32.totalorder %s18, 0
      %s171 = scalar_select %p170, %s18, 0
      %s172 = sadd.s32 %s171, %s169
      %s173 = smul.addr %s172, 8
      %s174 = scalar_lea.vmem %s1, %s173
      %p175 = scmp.lt.s32.totalorder %s17, 1
      %s176 = scalar_select %p175, %s17, 1
      %s177 = smul.addr %s176, 8
      %s178 = scalar_lea.vmem %s2, %s177
      %p179 = scmp.eq.s32.totalorder %s18, 0
      // Predicated region
      $region29: #{get_sample_loss.1} parent=27 // pred_check
        %p180 = pneg %p179
      $region30: #{get_sample_loss.1} parent=27 // pred_check_branch
        %182 = sbr.rel (%p180) target = $region32
      $region31: #{get_sample_loss.1} parent=27 // pred_region
        %183 = vst [vmem:[#allocation2] sm:$0xff] inf
        %184 = vst [vmem:[#allocation3] sm:$0x1] 0.0
      $region32: #{get_sample_loss.1} parent=27 // pred_fallthru
        _
      %v185 = vld [vmem:[%s167] sm:$0xff]
      %v186 = vld [vmem:[%s174] sm:$0xff]
      %vm187 = vcmask 64512
      %v189 = vsel %vm187, %v185, 0
      %191 = vmatprep.subr.mxu0 0.0
      %v192 = vand.u32 %v186, 4294901760
      %193 = vmatpush1.msra.mxu0 %v192
      %194 = vmatprep.subr.mxu0 0.0
      %195 = vmatpush1.msra.mxu0 0.0
      %196 = vmatprep.subr.mxu0 0.0
      %197 = vmatpush1.msra.mxu0 0.0
      %198 = vmatprep.subr.mxu0 0.0
      %199 = vmatpush1.msra.mxu0 0.0
      %200 = vmatprep.subr.mxu0 0.0
      %201 = vmatpush1.msra.mxu0 0.0
      %202 = vmatprep.subr.mxu0 0.0
      %203 = vmatpush1.msra.mxu0 0.0
      %204 = vmatprep.subr.mxu0 0.0
      %205 = vmatpush1.msra.mxu0 0.0
      %206 = vmatprep.subr.mxu0 0.0
      %207 = vmatpush1.msra.mxu0 0.0
      %208 = vmatprep.subr.mxu0 0.0
      %209 = vmatpush1.msra.mxu0 0.0
      %210 = vmatprep.subr.mxu0 0.0
      %211 = vmatpush1.msra.mxu0 0.0
      %212 = vmatprep.subr.mxu0 0.0
      %213 = vmatpush1.msra.mxu0 0.0
      %214 = vmatprep.subr.mxu0 0.0
      %215 = vmatpush1.msra.mxu0 0.0
      %216 = vmatprep.subr.mxu0 0.0
      %217 = vmatpush1.msra.mxu0 0.0
      %218 = vmatprep.subr.mxu0 0.0
      %219 = vmatpush1.msra.mxu0 0.0
      %220 = vmatprep.subr.mxu0 0.0
      %221 = vmatpush1.msra.mxu0 0.0
      %222 = vmatprep.subr.mxu0 0.0
      %223 = vmatpush1.msra.mxu0 0.0
      %224 = vmatprep.subr.mxu0 0.0
      %225 = vmatpush1.msra.mxu0 0.0
      %226 = vmatprep.subr.mxu0 0.0
      %227 = vmatpush1.msra.mxu0 0.0
      %228 = vmatprep.subr.mxu0 0.0
      %229 = vmatpush1.msra.mxu0 0.0
      %230 = vmatprep.subr.mxu0 0.0
      %231 = vmatpush1.msra.mxu0 0.0
      %232 = vmatprep.subr.mxu0 0.0
      %233 = vmatpush1.msra.mxu0 0.0
      %234 = vmatprep.subr.mxu0 0.0
      %235 = vmatpush1.msra.mxu0 0.0
      %236 = vmatprep.subr.mxu0 0.0
      %237 = vmatpush1.msra.mxu0 0.0
      %238 = vmatprep.subr.mxu0 0.0
      %239 = vmatpush1.msra.mxu0 0.0
      %240 = vmatprep.subr.mxu0 0.0
      %241 = vmatpush1.msra.mxu0 0.0
      %242 = vmatprep.subr.mxu0 0.0
      %243 = vmatpush1.msra.mxu0 0.0
      %244 = vmatprep.subr.mxu0 0.0
      %245 = vmatpush1.msra.mxu0 0.0
      %246 = vmatprep.subr.mxu0 0.0
      %247 = vmatpush1.msra.mxu0 0.0
      %248 = vmatprep.subr.mxu0 0.0
      %249 = vmatpush1.msra.mxu0 0.0
      %250 = vmatprep.subr.mxu0 0.0
      %251 = vmatpush1.msra.mxu0 0.0
      %252 = vmatprep.subr.mxu0 0.0
      %253 = vmatpush1.msra.mxu0 0.0
      %254 = vmatprep.subr.mxu0 0.0
      %255 = vmatpush1.msra.mxu0 0.0
      %256 = vmatprep.mubr.f32.mxu0 0.0
      %v257 = vand.u32 %v189, 4294901760
      %v258 = vsub.f32 %v189, %v257
      %v259 = vand.u32 %v258, 4294901760
      %v260 = vsub.f32 %v258, %v259
      %v261 = vand.u32 %v260, 4294901760
      %262 = vmatmul.mubr.f32.gmra.mrb[0].mxu0 %v261
      %v263 = vpop.f32.mrb[0].mxu0
      %v264 = vadd.f32 0.0, %v263
      %v265 = vpop.f32.mrb[0].mxu0
      %266 = vdwg.mxu0
      %267 = vmatprep.subr.mxu0 0.0
      %v268 = vand.u32 %v186, 4294901760
      %v269 = vsub.f32 %v186, %v268
      %v270 = vand.u32 %v269, 4294901760
      %v271 = vsub.f32 %v269, %v270
      %v272 = vand.u32 %v271, 4294901760
      %273 = vmatpush1.msra.mxu0 %v272
      %274 = vmatprep.subr.mxu0 0.0
      %275 = vmatpush1.msra.mxu0 0.0
      %276 = vmatprep.subr.mxu0 0.0
      %277 = vmatpush1.msra.mxu0 0.0
      %278 = vmatprep.subr.mxu0 0.0
      %279 = vmatpush1.msra.mxu0 0.0
      %280 = vmatprep.subr.mxu0 0.0
      %281 = vmatpush1.msra.mxu0 0.0
      %282 = vmatprep.subr.mxu0 0.0
      %283 = vmatpush1.msra.mxu0 0.0
      %284 = vmatprep.subr.mxu0 0.0
      %285 = vmatpush1.msra.mxu0 0.0
      %286 = vmatprep.subr.mxu0 0.0
      %287 = vmatpush1.msra.mxu0 0.0
      %288 = vmatprep.subr.mxu0 0.0
      %289 = vmatpush1.msra.mxu0 0.0
      %290 = vmatprep.subr.mxu0 0.0
      %291 = vmatpush1.msra.mxu0 0.0
      %292 = vmatprep.subr.mxu0 0.0
      %293 = vmatpush1.msra.mxu0 0.0
      %294 = vmatprep.subr.mxu0 0.0
      %295 = vmatpush1.msra.mxu0 0.0
      %296 = vmatprep.subr.mxu0 0.0
      %297 = vmatpush1.msra.mxu0 0.0
      %298 = vmatprep.subr.mxu0 0.0
      %299 = vmatpush1.msra.mxu0 0.0
      %300 = vmatprep.subr.mxu0 0.0
      %301 = vmatpush1.msra.mxu0 0.0
      %302 = vmatprep.subr.mxu0 0.0
      %303 = vmatpush1.msra.mxu0 0.0
      %304 = vmatprep.subr.mxu0 0.0
      %305 = vmatpush1.msra.mxu0 0.0
      %306 = vmatprep.subr.mxu0 0.0
      %307 = vmatpush1.msra.mxu0 0.0
      %308 = vmatprep.subr.mxu0 0.0
      %309 = vmatpush1.msra.mxu0 0.0
      %310 = vmatprep.subr.mxu0 0.0
      %311 = vmatpush1.msra.mxu0 0.0
      %312 = vmatprep.subr.mxu0 0.0
      %313 = vmatpush1.msra.mxu0 0.0
      %314 = vmatprep.subr.mxu0 0.0
      %315 = vmatpush1.msra.mxu0 0.0
      %316 = vmatprep.subr.mxu0 0.0
      %317 = vmatpush1.msra.mxu0 0.0
      %318 = vmatprep.subr.mxu0 0.0
      %319 = vmatpush1.msra.mxu0 0.0
      %320 = vmatprep.subr.mxu0 0.0
      %321 = vmatpush1.msra.mxu0 0.0
      %322 = vmatprep.subr.mxu0 0.0
      %323 = vmatpush1.msra.mxu0 0.0
      %324 = vmatprep.subr.mxu0 0.0
      %325 = vmatpush1.msra.mxu0 0.0
      %326 = vmatprep.subr.mxu0 0.0
      %327 = vmatpush1.msra.mxu0 0.0
      %328 = vmatprep.subr.mxu0 0.0
      %329 = vmatpush1.msra.mxu0 0.0
      %330 = vmatprep.subr.mxu0 0.0
      %331 = vmatpush1.msra.mxu0 0.0
      %332 = vmatprep.subr.mxu0 0.0
      %333 = vmatpush1.msra.mxu0 0.0
      %334 = vmatprep.subr.mxu0 0.0
      %335 = vmatpush1.msra.mxu0 0.0
      %336 = vmatprep.mubr.f32.mxu0 0.0
      %v337 = vand.u32 %v189, 4294901760
      %338 = vmatmul.mubr.f32.gmra.mrb[0].mxu0 %v337
      %v339 = vpop.f32.mrb[0].mxu0
      %v340 = vadd.f32 %v264, %v339
      %v341 = vpop.f32.mrb[0].mxu0
      %342 = vdwg.mxu0
      %343 = vmatprep.subr.mxu0 0.0
      %v344 = vand.u32 %v186, 4294901760
      %v345 = vsub.f32 %v186, %v344
      %346 = vmatpush1.msra.mxu0 %v345
      %347 = vmatprep.subr.mxu0 0.0
      %348 = vmatpush1.msra.mxu0 0.0
      %349 = vmatprep.subr.mxu0 0.0
      %350 = vmatpush1.msra.mxu0 0.0
      %351 = vmatprep.subr.mxu0 0.0
      %352 = vmatpush1.msra.mxu0 0.0
      %353 = vmatprep.subr.mxu0 0.0
      %354 = vmatpush1.msra.mxu0 0.0
      %355 = vmatprep.subr.mxu0 0.0
      %356 = vmatpush1.msra.mxu0 0.0
      %357 = vmatprep.subr.mxu0 0.0
      %358 = vmatpush1.msra.mxu0 0.0
      %359 = vmatprep.subr.mxu0 0.0
      %360 = vmatpush1.msra.mxu0 0.0
      %361 = vmatprep.subr.mxu0 0.0
      %362 = vmatpush1.msra.mxu0 0.0
      %363 = vmatprep.subr.mxu0 0.0
      %364 = vmatpush1.msra.mxu0 0.0
      %365 = vmatprep.subr.mxu0 0.0
      %366 = vmatpush1.msra.mxu0 0.0
      %367 = vmatprep.subr.mxu0 0.0
      %368 = vmatpush1.msra.mxu0 0.0
      %369 = vmatprep.subr.mxu0 0.0
      %370 = vmatpush1.msra.mxu0 0.0
      %371 = vmatprep.subr.mxu0 0.0
      %372 = vmatpush1.msra.mxu0 0.0
      %373 = vmatprep.subr.mxu0 0.0
      %374 = vmatpush1.msra.mxu0 0.0
      %375 = vmatprep.subr.mxu0 0.0
      %376 = vmatpush1.msra.mxu0 0.0
      %377 = vmatprep.subr.mxu0 0.0
      %378 = vmatpush1.msra.mxu0 0.0
      %379 = vmatprep.subr.mxu0 0.0
      %380 = vmatpush1.msra.mxu0 0.0
      %381 = vmatprep.subr.mxu0 0.0
      %382 = vmatpush1.msra.mxu0 0.0
      %383 = vmatprep.subr.mxu0 0.0
      %384 = vmatpush1.msra.mxu0 0.0
      %385 = vmatprep.subr.mxu0 0.0
      %386 = vmatpush1.msra.mxu0 0.0
      %387 = vmatprep.subr.mxu0 0.0
      %388 = vmatpush1.msra.mxu0 0.0
      %389 = vmatprep.subr.mxu0 0.0
      %390 = vmatpush1.msra.mxu0 0.0
      %391 = vmatprep.subr.mxu0 0.0
      %392 = vmatpush1.msra.mxu0 0.0
      %393 = vmatprep.subr.mxu0 0.0
      %394 = vmatpush1.msra.mxu0 0.0
      %395 = vmatprep.subr.mxu0 0.0
      %396 = vmatpush1.msra.mxu0 0.0
      %397 = vmatprep.subr.mxu0 0.0
      %398 = vmatpush1.msra.mxu0 0.0
      %399 = vmatprep.subr.mxu0 0.0
      %400 = vmatpush1.msra.mxu0 0.0
      %401 = vmatprep.subr.mxu0 0.0
      %402 = vmatpush1.msra.mxu0 0.0
      %403 = vmatprep.subr.mxu0 0.0
      %404 = vmatpush1.msra.mxu0 0.0
      %405 = vmatprep.subr.mxu0 0.0
      %406 = vmatpush1.msra.mxu0 0.0
      %407 = vmatprep.subr.mxu0 0.0
      %408 = vmatpush1.msra.mxu0 0.0
      %409 = vmatprep.mubr.f32.mxu0 0.0
      %v410 = vand.u32 %v189, 4294901760
      %v411 = vsub.f32 %v189, %v410
      %412 = vmatmul.mubr.f32.gmra.mrb[0].mxu0 %v411
      %v413 = vpop.f32.mrb[0].mxu0
      %v414 = vadd.f32 %v340, %v413
      %v415 = vpop.f32.mrb[0].mxu0
      %416 = vdwg.mxu0
      %417 = vmatprep.subr.mxu0 0.0
      %v418 = vand.u32 %v186, 4294901760
      %419 = vmatpush1.msra.mxu0 %v418
      %420 = vmatprep.subr.mxu0 0.0
      %421 = vmatpush1.msra.mxu0 0.0
      %422 = vmatprep.subr.mxu0 0.0
      %423 = vmatpush1.msra.mxu0 0.0
      %424 = vmatprep.subr.mxu0 0.0
      %425 = vmatpush1.msra.mxu0 0.0
      %426 = vmatprep.subr.mxu0 0.0
      %427 = vmatpush1.msra.mxu0 0.0
      %428 = vmatprep.subr.mxu0 0.0
      %429 = vmatpush1.msra.mxu0 0.0
      %430 = vmatprep.subr.mxu0 0.0
      %431 = vmatpush1.msra.mxu0 0.0
      %432 = vmatprep.subr.mxu0 0.0
      %433 = vmatpush1.msra.mxu0 0.0
      %434 = vmatprep.subr.mxu0 0.0
      %435 = vmatpush1.msra.mxu0 0.0
      %436 = vmatprep.subr.mxu0 0.0
      %437 = vmatpush1.msra.mxu0 0.0
      %438 = vmatprep.subr.mxu0 0.0
      %439 = vmatpush1.msra.mxu0 0.0
      %440 = vmatprep.subr.mxu0 0.0
      %441 = vmatpush1.msra.mxu0 0.0
      %442 = vmatprep.subr.mxu0 0.0
      %443 = vmatpush1.msra.mxu0 0.0
      %444 = vmatprep.subr.mxu0 0.0
      %445 = vmatpush1.msra.mxu0 0.0
      %446 = vmatprep.subr.mxu0 0.0
      %447 = vmatpush1.msra.mxu0 0.0
      %448 = vmatprep.subr.mxu0 0.0
      %449 = vmatpush1.msra.mxu0 0.0
      %450 = vmatprep.subr.mxu0 0.0
      %451 = vmatpush1.msra.mxu0 0.0
      %452 = vmatprep.subr.mxu0 0.0
      %453 = vmatpush1.msra.mxu0 0.0
      %454 = vmatprep.subr.mxu0 0.0
      %455 = vmatpush1.msra.mxu0 0.0
      %456 = vmatprep.subr.mxu0 0.0
      %457 = vmatpush1.msra.mxu0 0.0
      %458 = vmatprep.subr.mxu0 0.0
      %459 = vmatpush1.msra.mxu0 0.0
      %460 = vmatprep.subr.mxu0 0.0
      %461 = vmatpush1.msra.mxu0 0.0
      %462 = vmatprep.subr.mxu0 0.0
      %463 = vmatpush1.msra.mxu0 0.0
      %464 = vmatprep.subr.mxu0 0.0
      %465 = vmatpush1.msra.mxu0 0.0
      %466 = vmatprep.subr.mxu0 0.0
      %467 = vmatpush1.msra.mxu0 0.0
      %468 = vmatprep.subr.mxu0 0.0
      %469 = vmatpush1.msra.mxu0 0.0
      %470 = vmatprep.subr.mxu0 0.0
      %471 = vmatpush1.msra.mxu0 0.0
      %472 = vmatprep.subr.mxu0 0.0
      %473 = vmatpush1.msra.mxu0 0.0
      %474 = vmatprep.subr.mxu0 0.0
      %475 = vmatpush1.msra.mxu0 0.0
      %476 = vmatprep.subr.mxu0 0.0
      %477 = vmatpush1.msra.mxu0 0.0
      %478 = vmatprep.subr.mxu0 0.0
      %479 = vmatpush1.msra.mxu0 0.0
      %480 = vmatprep.subr.mxu0 0.0
      %481 = vmatpush1.msra.mxu0 0.0
      %482 = vmatprep.mubr.f32.mxu0 0.0
      %v483 = vand.u32 %v189, 4294901760
      %v484 = vsub.f32 %v189, %v483
      %v485 = vand.u32 %v484, 4294901760
      %486 = vmatmul.mubr.f32.gmra.mrb[0].mxu0 %v485
      %v487 = vpop.f32.mrb[0].mxu0
      %v488 = vadd.f32 %v414, %v487
      %v489 = vpop.f32.mrb[0].mxu0
      %490 = vdwg.mxu0
      %491 = vmatprep.subr.mxu0 0.0
      %v492 = vand.u32 %v186, 4294901760
      %v493 = vsub.f32 %v186, %v492
      %v494 = vand.u32 %v493, 4294901760
      %495 = vmatpush1.msra.mxu0 %v494
      %496 = vmatprep.subr.mxu0 0.0
      %497 = vmatpush1.msra.mxu0 0.0
      %498 = vmatprep.subr.mxu0 0.0
      %499 = vmatpush1.msra.mxu0 0.0
      %500 = vmatprep.subr.mxu0 0.0
      %501 = vmatpush1.msra.mxu0 0.0
      %502 = vmatprep.subr.mxu0 0.0
      %503 = vmatpush1.msra.mxu0 0.0
      %504 = vmatprep.subr.mxu0 0.0
      %505 = vmatpush1.msra.mxu0 0.0
      %506 = vmatprep.subr.mxu0 0.0
      %507 = vmatpush1.msra.mxu0 0.0
      %508 = vmatprep.subr.mxu0 0.0
      %509 = vmatpush1.msra.mxu0 0.0
      %510 = vmatprep.subr.mxu0 0.0
      %511 = vmatpush1.msra.mxu0 0.0
      %512 = vmatprep.subr.mxu0 0.0
      %513 = vmatpush1.msra.mxu0 0.0
      %514 = vmatprep.subr.mxu0 0.0
      %515 = vmatpush1.msra.mxu0 0.0
      %516 = vmatprep.subr.mxu0 0.0
      %517 = vmatpush1.msra.mxu0 0.0
      %518 = vmatprep.subr.mxu0 0.0
      %519 = vmatpush1.msra.mxu0 0.0
      %520 = vmatprep.subr.mxu0 0.0
      %521 = vmatpush1.msra.mxu0 0.0
      %522 = vmatprep.subr.mxu0 0.0
      %523 = vmatpush1.msra.mxu0 0.0
      %524 = vmatprep.subr.mxu0 0.0
      %525 = vmatpush1.msra.mxu0 0.0
      %526 = vmatprep.subr.mxu0 0.0
      %527 = vmatpush1.msra.mxu0 0.0
      %528 = vmatprep.subr.mxu0 0.0
      %529 = vmatpush1.msra.mxu0 0.0
      %530 = vmatprep.subr.mxu0 0.0
      %531 = vmatpush1.msra.mxu0 0.0
      %532 = vmatprep.subr.mxu0 0.0
      %533 = vmatpush1.msra.mxu0 0.0
      %534 = vmatprep.subr.mxu0 0.0
      %535 = vmatpush1.msra.mxu0 0.0
      %536 = vmatprep.subr.mxu0 0.0
      %537 = vmatpush1.msra.mxu0 0.0
      %538 = vmatprep.subr.mxu0 0.0
      %539 = vmatpush1.msra.mxu0 0.0
      %540 = vmatprep.subr.mxu0 0.0
      %541 = vmatpush1.msra.mxu0 0.0
      %542 = vmatprep.subr.mxu0 0.0
      %543 = vmatpush1.msra.mxu0 0.0
      %544 = vmatprep.subr.mxu0 0.0
      %545 = vmatpush1.msra.mxu0 0.0
      %546 = vmatprep.subr.mxu0 0.0
      %547 = vmatpush1.msra.mxu0 0.0
      %548 = vmatprep.subr.mxu0 0.0
      %549 = vmatpush1.msra.mxu0 0.0
      %550 = vmatprep.subr.mxu0 0.0
      %551 = vmatpush1.msra.mxu0 0.0
      %552 = vmatprep.subr.mxu0 0.0
      %553 = vmatpush1.msra.mxu0 0.0
      %554 = vmatprep.subr.mxu0 0.0
      %555 = vmatpush1.msra.mxu0 0.0
      %556 = vmatprep.subr.mxu0 0.0
      %557 = vmatpush1.msra.mxu0 0.0
      %558 = vmatprep.mubr.f32.mxu0 0.0
      %v559 = vand.u32 %v189, 4294901760
      %560 = vmatmul.mubr.f32.gmra.mrb[0].mxu0 %v559
      %v561 = vpop.f32.mrb[0].mxu0
      %v562 = vadd.f32 %v488, %v561
      %v563 = vpop.f32.mrb[0].mxu0
      %564 = vdwg.mxu0
      %565 = vmatprep.subr.mxu0 0.0
      %v566 = vand.u32 %v186, 4294901760
      %567 = vmatpush1.msra.mxu0 %v566
      %568 = vmatprep.subr.mxu0 0.0
      %569 = vmatpush1.msra.mxu0 0.0
      %570 = vmatprep.subr.mxu0 0.0
      %571 = vmatpush1.msra.mxu0 0.0
      %572 = vmatprep.subr.mxu0 0.0
      %573 = vmatpush1.msra.mxu0 0.0
      %574 = vmatprep.subr.mxu0 0.0
      %575 = vmatpush1.msra.mxu0 0.0
      %576 = vmatprep.subr.mxu0 0.0
      %577 = vmatpush1.msra.mxu0 0.0
      %578 = vmatprep.subr.mxu0 0.0
      %579 = vmatpush1.msra.mxu0 0.0
      %580 = vmatprep.subr.mxu0 0.0
      %581 = vmatpush1.msra.mxu0 0.0
      %582 = vmatprep.subr.mxu0 0.0
      %583 = vmatpush1.msra.mxu0 0.0
      %584 = vmatprep.subr.mxu0 0.0
      %585 = vmatpush1.msra.mxu0 0.0
      %586 = vmatprep.subr.mxu0 0.0
      %587 = vmatpush1.msra.mxu0 0.0
      %588 = vmatprep.subr.mxu0 0.0
      %589 = vmatpush1.msra.mxu0 0.0
      %590 = vmatprep.subr.mxu0 0.0
      %591 = vmatpush1.msra.mxu0 0.0
      %592 = vmatprep.subr.mxu0 0.0
      %593 = vmatpush1.msra.mxu0 0.0
      %594 = vmatprep.subr.mxu0 0.0
      %595 = vmatpush1.msra.mxu0 0.0
      %596 = vmatprep.subr.mxu0 0.0
      %597 = vmatpush1.msra.mxu0 0.0
      %598 = vmatprep.subr.mxu0 0.0
      %599 = vmatpush1.msra.mxu0 0.0
      %600 = vmatprep.subr.mxu0 0.0
      %601 = vmatpush1.msra.mxu0 0.0
      %602 = vmatprep.subr.mxu0 0.0
      %603 = vmatpush1.msra.mxu0 0.0
      %604 = vmatprep.subr.mxu0 0.0
      %605 = vmatpush1.msra.mxu0 0.0
      %606 = vmatprep.subr.mxu0 0.0
      %607 = vmatpush1.msra.mxu0 0.0
      %608 = vmatprep.subr.mxu0 0.0
      %609 = vmatpush1.msra.mxu0 0.0
      %610 = vmatprep.subr.mxu0 0.0
      %611 = vmatpush1.msra.mxu0 0.0
      %612 = vmatprep.subr.mxu0 0.0
      %613 = vmatpush1.msra.mxu0 0.0
      %614 = vmatprep.subr.mxu0 0.0
      %615 = vmatpush1.msra.mxu0 0.0
      %616 = vmatprep.subr.mxu0 0.0
      %617 = vmatpush1.msra.mxu0 0.0
      %618 = vmatprep.subr.mxu0 0.0
      %619 = vmatpush1.msra.mxu0 0.0
      %620 = vmatprep.subr.mxu0 0.0
      %621 = vmatpush1.msra.mxu0 0.0
      %622 = vmatprep.subr.mxu0 0.0
      %623 = vmatpush1.msra.mxu0 0.0
      %624 = vmatprep.subr.mxu0 0.0
      %625 = vmatpush1.msra.mxu0 0.0
      %626 = vmatprep.subr.mxu0 0.0
      %627 = vmatpush1.msra.mxu0 0.0
      %628 = vmatprep.subr.mxu0 0.0
      %629 = vmatpush1.msra.mxu0 0.0
      %630 = vmatprep.mubr.f32.mxu0 0.0
      %v631 = vand.u32 %v189, 4294901760
      %632 = vmatmul.mubr.f32.gmra.mrb[0].mxu0 %v631
      %v633 = vpop.f32.mrb[0].mxu0
      %v634 = vadd.f32 %v562, %v633
      %v635 = vpop.f32.mrb[0].mxu0
      %636 = vdwg.mxu0
      %v637 = vmax.f32 %v634, 0.0
      %p638 = scmp.ne.s32.totalorder %s18, 0
      // Predicated region
      $region33: #{get_sample_loss.1} parent=27 // pred_check
        %p639 = pneg %p638
      $region34: #{get_sample_loss.1} parent=27 // pred_check_branch
        %641 = sbr.rel (%p639) target = $region36
      $region35: #{get_sample_loss.1} parent=27 // pred_region
        %v642 = vrot.slane %v637, 4
        %v643 = vmin.f32 %v637, %v642
        %v644 = vrot.slane %v643, 2
        %v645 = vmin.f32 %v643, %v644
        %v646 = vrot.slane %v645, 1
        %v647 = vmin.f32 %v645, %v646
        %v648 = vld [vmem:[#allocation2] sm:$0xff]
        %v649 = vmin.f32 %v648, %v637
        %650 = vst [vmem:[#allocation2] sm:$0xff] %v649
        %v651 = vld [vmem:[#allocation3] sm:$0x1]
        %v652 = vadd.f32 %v651, %v647
        %653 = vst [vmem:[#allocation3] sm:$0x1] %v652
      $region36: #{get_sample_loss.1} parent=27 // pred_fallthru
        _
      // Predicated region
      $region37: #{get_sample_loss.1} parent=27 // pred_check
        %p654 = pneg %p179
      $region38: #{get_sample_loss.1} parent=27 // pred_check_branch
        %656 = sbr.rel (%p654) target = $region40
      $region39: #{get_sample_loss.1} parent=27 // pred_region
        %v657 = vlaneseq
        %v658 = vand.u32 %v657, 127
        %s659 = smul.u32 %s18, 128
        %v660 = vstv %s659
        %v661 = vadd.s32 %v660, %v658
        %vm662 = vcmp.lt.s32.totalorder %v661, 16
        %v663 = vsel %vm662, 1, 0
        %vm664 = vcmp.eq.s32.totalorder %v663, 1
        %v665 = vsel %vm664, %v637, inf
        %v666 = vrot.slane %v665, 4
        %v667 = vmin.f32 %v665, %v666
        %v668 = vrot.slane %v667, 2
        %v669 = vmin.f32 %v667, %v668
        %v670 = vrot.slane %v669, 1
        %v671 = vmin.f32 %v669, %v670
        %v672 = vsel %vm662, %v671, 0.0
        %v673 = vld [vmem:[#allocation2] sm:$0xff]
        %v674 = vmin.f32 %v673, %v665
        %675 = vst [vmem:[#allocation2] sm:$0xff] %v674
        %v676 = vld [vmem:[#allocation3] sm:$0x1]
        %v677 = vadd.f32 %v676, %v672
        %678 = vst [vmem:[#allocation3] sm:$0x1] %v677
        %v679 = vld [vmem:[#allocation2] sm:$0xff]
        %680 = vmin.xlane.f32.xlu0 %v679
        %v681 = vpop.xlane.xlu0 %680
        %vm682 = vcmask 7168
        %v683 = vsel %vm682, %v681, 0.0
        %684 = vadd.xlane.f32.xlu0 %v683
        %v685 = vpop.xlane.xlu0 %684
        %v686 = vrot.slane %v685, 4
        %v687 = vadd.f32 %v685, %v686
        %v688 = vrot.slane %v687, 2
        %v689 = vadd.f32 %v687, %v688
        %v690 = vrot.slane %v689, 1
        %v691 = vadd.f32 %v689, %v690
        %s692 = vtos %v691
        %v693 = vrot.slane %v681, 4
        %v694 = vmax.f32 %v681, %v693
        %v695 = vrot.slane %v694, 2
        %v696 = vmax.f32 %v694, %v695
        %v697 = vrot.slane %v696, 1
        %v698 = vmax.f32 %v696, %v697
        %s699 = vtos %v698
        %v700 = vld [vmem:[#allocation3] sm:$0x1]
        %vm701 = vcmask 1040384
        %v702 = vsel %vm701, %v700, 0.0
        %703 = vadd.xlane.f32.xlu0 %v702
        %v704 = vpop.xlane.xlu0 %703
        %v705 = vrot.slane %v704, 4
        %v706 = vadd.f32 %v704, %v705
        %v707 = vrot.slane %v706, 2
        %v708 = vadd.f32 %v706, %v707
        %v709 = vrot.slane %v708, 1
        %v710 = vadd.f32 %v708, %v709
        %s711 = vtos %v710
        %v712 = vlaneseq
        %v713 = vshrl.u32 %v712, 7
        %vm714 = vcmp.eq.s32.totalorder %v713, 0
        %vm715 = vcmp.eq.s32.totalorder %v658, 0
        %vm716 = vmand %vm714, %vm715
        %vm717 = vcmp.eq.s32.totalorder %v658, 1
        %vm718 = vmand %vm714, %vm717
        %vm719 = vcmp.eq.s32.totalorder %v658, 2
        %vm720 = vmand %vm714, %vm719
        %v721 = vstv %s711
        %v722 = vsel %vm720, %v721, 0.0
        %v723 = vstv %s699
        %v724 = vsel %vm718, %v723, %v722
        %v725 = vstv %s692
        %v726 = vsel %vm716, %v725, %v724
        %727 = vst [vmem:[%s178] sm:$0xff] %v726
      $region40: #{get_sample_loss.1} parent=27 // pred_fallthru
        _
      %p728 = scmp.lt.s32.totalorder %s17, 1
      %s729 = scalar_select %p728, %s17, 1
      %s730 = smul.addr %s729, 8
      %s731 = scalar_lea.vmem %s2, %s730
      // Predicated region
      $region41: #{get_sample_loss.1} parent=27 // pred_check
        %p732 = pneg %p97
      $region42: #{get_sample_loss.1} parent=27 // pred_check_branch
        %734 = sbr.rel (%p732) target = $region44
      $region43: #{get_sample_loss.1} parent=27 // pred_region
        _
      $region44: #{get_sample_loss.1} parent=27 // pred_fallthru
        _
    $region28: #{get_sample_loss.1} parent=5 // pred_fallthru
      _
    %p735 = scmp.le.s32.totalorder 2, %s8
    // Predicated region
    $region45: #{get_sample_loss.1} parent=5 // pred_check
      %p736 = pneg %p735
    $region46: #{get_sample_loss.1} parent=5 // pred_check_branch
      %738 = sbr.rel (%p736) target = $region48
    $region47: #{get_sample_loss.1} parent=5 // pred_region
      %s739 = ssub.s32 %s8, 2
      // Predicated region
      $region49: #{get_sample_loss.1} parent=47 // pred_check
        %p740 = pneg %p103
      $region50: #{get_sample_loss.1} parent=47 // pred_check_branch
        %742 = sbr.rel (%p740) target = $region52
      $region51: #{get_sample_loss.1} parent=47 // pred_region
        %p743 = scmp.lt.s32.totalorder %s19, 1
        %s744 = scalar_select %p743, %s19, 1
        %s745 = smul.addr %s744, 8
        %s746 = scalar_lea.vmem %s2, %s745
      $region52: #{get_sample_loss.1} parent=47 // pred_fallthru
        _
    $region48: #{get_sample_loss.1} parent=5 // pred_fallthru
      _
  $region6: #{get_sample_loss.1} parent=0 // loop_footer
    %s12 = sadd.s32 1, %s8
  $region7: #{get_sample_loss.1} parent=0 // loop_footer_branch
    %7 = sbr.rel target = $region3
  $region8: #{get_sample_loss.1} parent=0 // loop_exit
    _

</llo_original>
